<compile_context>
chip_gen: v6e
topology: v6e:2x2x1
jax: 0.10.0
libtpu: 0.0.40
codegen_flags: <defaults>
</compile_context>

<pallas_src>
import functools

import jax
import jax.numpy as jnp
from jax.experimental import pallas as pl
from jax.experimental.pallas import tpu as pltpu


def _softplus(z):
    # numerically stable log(1 + exp(z)) using only exp/log/abs/max (VPU+EUP friendly)
    return jnp.maximum(z, 0.0) + jnp.log(1.0 + jnp.exp(-jnp.abs(z)))


# ----------------------------- kernels ------------------------------------
# Layout inside every kernel: feature dim D on sublanes, batch TB on lanes.
#   x_ref, v_ref, x_out_ref : (D, TB)
#   wT_ref : (Ncol, D), bT_ref : (Ncol, 1), ld_out_ref : (1, TB)

def planar_flow_kernel(x_ref, v_ref, wT_ref, bT_ref, x_out_ref, ld_out_ref,
                       *, L, D):
    """Planar flow chain.  Packed rows: [Wu_0..Wu_{L-1} | Ww_0.. | wb_0..]."""
    x = x_ref[...]                                            # (D, TB)
    v = v_ref[...]                                            # (D, TB)

    # one lane-dense MXU call for every v-dependent linear map of the chain
    vw = jnp.dot(wT_ref[...], v, preferred_element_type=jnp.float32) \
        + bT_ref[...]                                         # (2*L*D + L, TB)

    LD = L * D
    log_det = jnp.zeros((1, x.shape[1]), jnp.float32)
    for l in range(L):
        # per-layer slices of the resident vw (sublane-aligned row ranges)
        u = vw[l * D:(l + 1) * D, :]                          # (D, TB)
        w = vw[LD + l * D:LD + (l + 1) * D, :]                # (D, TB)
        b = vw[2 * LD + l:2 * LD + l + 1, :]                  # (1, TB)

        inner = jnp.sum(w * u, axis=0, keepdims=True)         # (1, TB)
        wsum = jnp.sum(w * w, axis=0, keepdims=True)          # (1, TB)
        m_inner = _softplus(inner) - 1.0
        # u <- u + (m(inner) - inner) * w / (w.w)   (exact reciprocal)
        u = u + (m_inner - inner) * w * pl.reciprocal(wsum, approx=False)

        act = jnp.sum(w * x, axis=0, keepdims=True) + b       # (1, TB)
        th = jnp.tanh(act)
        x = x + u * th
        # exact identity: u_new . psi = (1 - tanh^2) * (softplus(inner) - 1)
        log_det = log_det + jnp.log(jnp.abs(1.0 + (1.0 - th * th) * m_inner))

    x_out_ref[...] = x
    ld_out_ref[...] = log_det


def radial_flow_kernel(x_ref, v_ref, wT_ref, bT_ref, x_out_ref, ld_out_ref,
                       *, L, D):
    """Radial flow chain.  Packed rows: [Wc_0..Wc_{L-1} | wa_0.. | wb_0..]."""
    x = x_ref[...]
    v = v_ref[...]

    vw = jnp.dot(wT_ref[...], v, preferred_element_type=jnp.float32) \
        + bT_ref[...]                                         # (L*D + 2L, TB)

    LD = L * D
    log_det = jnp.zeros((1, x.shape[1]), jnp.float32)
    for l in range(L):
        c = vw[l * D:(l + 1) * D, :]                          # (D, TB)
        a = jnp.exp(vw[LD + l:LD + l + 1, :])                 # (1, TB)
        b = -a + _softplus(vw[LD + L + l:LD + L + l + 1, :])  # (1, TB)

        diff = x - c
        r = jnp.sqrt(jnp.sum(diff * diff, axis=0, keepdims=True))
        # exact reciprocal: the (D-1)*log(1+tmp) term amplifies error by ~D
        h = pl.reciprocal(a + r, approx=False)
        tmp = b * h
        x = x + tmp * diff
        log_det = log_det + float(D - 1) * jnp.log(1.0 + tmp) \
            + jnp.log(1.0 + tmp - b * h * h * r)

    x_out_ref[...] = x
    ld_out_ref[...] = log_det


def householder_flow_kernel(x_ref, v_ref, wT_ref, bT_ref, x_out_ref, ld_out_ref,
                            *, L, D):
    """Householder flow chain with the serial v-chain prefix-composed in the
    wrapper: row block l of wT/bT directly produces the layer-l reflection
    vector v_l = v @ (W_0..W_l) + c_l, so the kernel is one matmul + VPU work."""
    x = x_ref[...]
    v = v_ref[...]

    vw = jnp.dot(wT_ref[...], v, preferred_element_type=jnp.float32) \
        + bT_ref[...]                                         # (L*D, TB)

    for l in range(L):
        vl = vw[l * D:(l + 1) * D, :]                         # (D, TB)
        v_sqr = jnp.sum(vl * vl, axis=0, keepdims=True)       # (1, TB)
        vx = jnp.sum(vl * x, axis=0, keepdims=True)           # (1, TB)
        # (I - 2 v v^T / |v|^2) x  ==  x - 2 v (v.x)/|v|^2    (exact reciprocal)
        x = x - 2.0 * vl * (vx * pl.reciprocal(v_sqr, approx=False))

    x_out_ref[...] = x
    ld_out_ref[...] = jnp.zeros(ld_out_ref.shape, ld_out_ref.dtype)


# ------------------------- weight pre-packing ------------------------------
# Pack into a single (Ncol, D) matrix so the kernel computes vw = W_all^T @ v^T.

def _prep_planar(params):
    wu, bu = params["wu"], params["bu"]        # (L,D,D) [stored as W^T], (L,D)
    ww, bw = params["ww"], params["bw"]        # (L,D,D), (L,D)
    wb, bb = params["wb"], params["bb"]        # (L,D),   (L,1)
    L, D, _ = wu.shape
    wT = jnp.concatenate([
        jnp.transpose(wu, (0, 2, 1)).reshape(L * D, D),
        jnp.transpose(ww, (0, 2, 1)).reshape(L * D, D),
        wb,
    ], axis=0)                                               # (2LD + L, D)
    bT = jnp.concatenate([
        bu.reshape(L * D, 1), bw.reshape(L * D, 1), bb.reshape(L, 1)], axis=0)
    return wT, bT, L


def _prep_radial(params):
    wc, bc = params["wc"], params["bc"]        # (L,D,D), (L,D)
    wa, ba = params["wa"], params["ba"]        # (L,D),   (L,1)
    wb, bb = params["wb"], params["bb"]        # (L,D),   (L,1)
    L, D, _ = wc.shape
    wT = jnp.concatenate([
        jnp.transpose(wc, (0, 2, 1)).reshape(L * D, D), wa, wb], axis=0)
    bT = jnp.concatenate([
        bc.reshape(L * D, 1), ba.reshape(L, 1), bb.reshape(L, 1)], axis=0)
    return wT, bT, L


def _prep_householder(params):
    """Prefix-compose the affine v-chain: v_l = v0 @ M_l + c_l."""
    wv, bv = params["wv"], params["bv"]        # (L,D,D) [stored as W^T], (L,D)
    L, D, _ = wv.shape
    Ms, cs = [], []
    M = jnp.eye(D, dtype=jnp.float32)
    c = jnp.zeros((D,), jnp.float32)
    for l in range(L):
        M = M @ wv[l]
        c = c @ wv[l] + bv[l]
        Ms.append(M.T)                         # (D_out, D_in) for W^T @ v^T
        cs.append(c[:, None])
    return jnp.concatenate(Ms, axis=0), jnp.concatenate(cs, axis=0), L


# ----------------------------- wrapper ------------------------------------

def _pick_tb(B, block_b):
    """Batch block size: multiple of 128 lanes when the batch can be split
    (and prefer >= 2 blocks so v7x's two TensorCores both get work);
    otherwise a single full block (always legal)."""
    if B <= 128 or B % 128 != 0:
        return B
    cap = max((min(block_b, B // 2) // 128) * 128, 128)
    for tb in range(cap, 0, -128):
        if B % tb == 0:
            return tb
    return B


def flow_forward(x, v, params, flow_type, *, block_b=512):
    """Equivalent of Flow.forward: returns (x_transformed, log_det), shapes (B,D),(B,1)."""
    B, D = x.shape
    if flow_type not in ("planar", "radial", "householder") or params is None:
        # empty flow chain -> identity, zero log-det
        return x, jnp.zeros((B, 1), jnp.float32)

    if flow_type == "planar":
        wT, bT, L = _prep_planar(params)
        kernel = functools.partial(planar_flow_kernel, L=L, D=D)
        transcendentals = 6 * B * L                 # softplus + tanh + log + rcp
    elif flow_type == "radial":
        wT, bT, L = _prep_radial(params)
        kernel = functools.partial(radial_flow_kernel, L=L, D=D)
        transcendentals = 8 * B * L                 # exp + softplus + sqrt + rcp + logs
    else:
        wT, bT, L = _prep_householder(params)
        kernel = functools.partial(householder_flow_kernel, L=L, D=D)
        transcendentals = 2 * B * L                 # reciprocals

    ncol = wT.shape[0]

    # batch on the lane axis
    xT = x.T                                        # (D, B)
    vT = v.T

    TB = _pick_tb(B, block_b)
    assert B % TB == 0
    grid = (B // TB,)

    col_spec = pl.BlockSpec((D, TB), lambda i: (0, i))
    ld_spec = pl.BlockSpec((1, TB), lambda i: (0, i))
    weight_specs = [
        # broadcast index_map -> weights stay resident across batch blocks
        # TODO(synk): for very large D*L on v7x (64 MiB VMEM), use
        #             pipeline_mode=pl.Buffered(1) here / stream over an L axis.
        pl.BlockSpec((ncol, D), lambda i: (0, 0)),
        pl.BlockSpec((ncol, 1), lambda i: (0, 0)),
    ]

    flops = 2 * B * D * ncol + 16 * B * D * L
    bytes_accessed = (3 * B * D + B + ncol * (D + 1)) * 4

    # explicit VMEM budget: double-buffered x/v/out blocks + resident weights
    # + the (ncol, TB) vw intermediate + per-layer temporaries, with headroom.
    ws = (3 * 2 * TB * D + 2 * 2 * TB
          + 2 * ncol * (D + 1)
          + ncol * TB + 4 * TB * D) * 4
    vmem_limit = int(min(max(4 * ws, 8 * 1024 * 1024), 32 * 1024 * 1024))

    xT_out, ldT = pl.pallas_call(
        kernel,
        out_shape=(jax.ShapeDtypeStruct((D, B), jnp.float32),
                   jax.ShapeDtypeStruct((1, B), jnp.float32)),
        grid=grid,
        in_specs=[col_spec, col_spec] + weight_specs,
        out_specs=(col_spec, ld_spec),
        compiler_params=pltpu.CompilerParams(
            dimension_semantics=("parallel",),
            vmem_limit_bytes=vmem_limit),
        cost_estimate=pl.CostEstimate(
            flops=flops, transcendentals=transcendentals,
            bytes_accessed=bytes_accessed),
    )(xT, vT, wT, bT)

    return xT_out.T, ldT.T


# ------------------------ parameter construction ---------------------------

def _init_linear(key, in_dim, out_dim):
    """PyTorch-style nn.Linear default init; returns W^T (in,out) and bias (out,)."""
    k1, k2 = jax.random.split(key)
    bound = 1.0 / (in_dim ** 0.5)
    W = jax.random.uniform(k1, (out_dim, in_dim), jnp.float32, -bound, bound)
    b = jax.random.uniform(k2, (out_dim,), jnp.float32, -bound, bound)
    return W.T, b


def init_flow_params(key, dim, flow_type, length):
    if flow_type == "planar":
        wu, bu, ww, bw, wb, bb = [], [], [], [], [], []
        for l in range(length):
            ku, kw, kb = jax.random.split(jax.random.fold_in(key, l), 3)
            Wt, b = _init_linear(ku, dim, dim); wu.append(Wt); bu.append(b)
            Wt, b = _init_linear(kw, dim, dim); ww.append(Wt); bw.append(b)
            Wt, b = _init_linear(kb, dim, 1);   wb.append(Wt[:, 0]); bb.append(b)
        return dict(wu=jnp.stack(wu), bu=jnp.stack(bu),
                    ww=jnp.stack(ww), bw=jnp.stack(bw),
                    wb=jnp.stack(wb), bb=jnp.stack(bb))
    if flow_type == "radial":
        wa, ba, wb, bb, wc, bc = [], [], [], [], [], []
        for l in range(length):
            ka, kb, kc = jax.random.split(jax.random.fold_in(key, l), 3)
            Wt, b = _init_linear(ka, dim, 1);   wa.append(Wt[:, 0]); ba.append(b)
            Wt, b = _init_linear(kb, dim, 1);   wb.append(Wt[:, 0]); bb.append(b)
            Wt, b = _init_linear(kc, dim, dim); wc.append(Wt);       bc.append(b)
        return dict(wa=jnp.stack(wa), ba=jnp.stack(ba),
                    wb=jnp.stack(wb), bb=jnp.stack(bb),
                    wc=jnp.stack(wc), bc=jnp.stack(bc))
    if flow_type == "householder":
        wv, bv = [], []
        for l in range(length):
            kv = jax.random.fold_in(key, l)
            Wt, b = _init_linear(kv, dim, dim); wv.append(Wt); bv.append(b)
        return dict(wv=jnp.stack(wv), bv=jnp.stack(bv))
    return None  # empty flow


# --------------------------- pure-JAX reference -----------------------------

def flow_reference(x, v, params, flow_type):
    """Straightforward (unfused, unsimplified) translation of the PyTorch module."""
    B, D = x.shape
    log_det = jnp.zeros((B, 1), jnp.float32)
    if flow_type == "planar":
        L = params["wu"].shape[0]
        for l in range(L):
            u = v @ params["wu"][l] + params["bu"][l][None, :]
            w = v @ params["ww"][l] + params["bw"][l][None, :]
            b = jnp.sum(v * params["wb"][l][None, :], 1, keepdims=True) + params["bb"][l][None, :]
            inner = jnp.sum(w * u, 1, keepdims=True)
            u = u + (_softplus(inner) - 1.0 - inner) * w / jnp.sum(w * w, 1, keepdims=True)
            act = jnp.sum(w * x, 1, keepdims=True) + b
            th = jnp.tanh(act)
            x = x + u * th
            psi = (1.0 - th * th) * w
            log_det = log_det + jnp.log(jnp.abs(1.0 + jnp.sum(u * psi, 1, keepdims=True)))
    elif flow_type == "radial":
        L = params["wc"].shape[0]
        for l in range(L):
            a = jnp.sum(v * params["wa"][l][None, :], 1, keepdims=True) + params["ba"][l][None, :]
            b = jnp.sum(v * params["wb"][l][None, :], 1, keepdims=True) + params["bb"][l][None, :]
            c = v @ params["wc"][l] + params["bc"][l][None, :]
            a = jnp.exp(a)
            b = -a + _softplus(b)
            diff = x - c
            r = jnp.sqrt(jnp.sum(diff * diff, 1, keepdims=True))
            h = 1.0 / (a + r)
            tmp = b * h
            x = x + tmp * diff
            log_det = log_det + (D - 1) * jnp.log(1.0 + tmp) + jnp.log(1.0 + tmp - b * h * h * r)
    elif flow_type == "householder":
        L = params["wv"].shape[0]
        for l in range(L):
            v = v @ params["wv"][l] + params["bv"][l][None, :]
            x = x - 2.0 * v * jnp.sum(v * x, 1, keepdims=True) / jnp.sum(v * v, 1, keepdims=True)
    return x, log_det


# --------------------------------- main -------------------------------------

if __name__ == "__main__":
    key = jax.random.PRNGKey(0)
    B, D, L = 8, 32, 3
    kx, kv, kp = jax.random.split(key, 3)
    x = jax.random.normal(kx, (B, D), jnp.float32)
    v = jax.random.normal(kv, (B, D), jnp.float32)

    for flow_type in ("planar", "radial", "householder"):
        params = init_flow_params(kp, D, flow_type, L)
        x_out, log_det = flow_forward(x, v, params, flow_type)
        jax.block_until_ready((x_out, log_det))
        x_ref, ld_ref = flow_reference(x, v, params, flow_type)
        assert jnp.allclose(x_out, x_ref, atol=1e-3, rtol=1e-3), flow_type
        assert jnp.allclose(log_det, ld_ref, atol=1e-3, rtol=1e-3), flow_type

    # empty flow chain (unknown type) is an identity map with zero log-det
    x_out, log_det = flow_forward(x, v, None, "none")
    jax.block_until_ready((x_out, log_det))
    assert jnp.allclose(x_out, x) and jnp.allclose(log_det, 0.0)

    print("KERNEL_OK")
</pallas_src>

<mosaic_0001>
module attributes {stable_mosaic.version = 11 : i64} {
  func.func @planar_flow_kernel(%arg0: i32, %arg1: memref<32x8xf32, #tpu.memory_space<vmem>>, %arg2: memref<32x8xf32, #tpu.memory_space<vmem>>, %arg3: memref<195x32xf32, #tpu.memory_space<vmem>>, %arg4: memref<195x1xf32, #tpu.memory_space<vmem>>, %arg5: memref<32x8xf32, #tpu.memory_space<vmem>>, %arg6: memref<1x8xf32, #tpu.memory_space<vmem>>) attributes {dimension_semantics = [#tpu.dimension_semantics<parallel>], iteration_bounds = array<i64: 1>, scalar_prefetch = 0 : i64, scratch_operands = 0 : i64, tpu.core_type = #tpu.core_type<tc>, window_params = [{transform_indices = @transform_0, window_bounds = array<i64: 32, 8>}, {transform_indices = @transform_1, window_bounds = array<i64: 32, 8>}, {pipeline_mode = #tpu.pipeline_mode<synchronous>, transform_indices = @transform_2, window_bounds = array<i64: 195, 32>}, {pipeline_mode = #tpu.pipeline_mode<synchronous>, transform_indices = @transform_3, window_bounds = array<i64: 195, 1>}, {transform_indices = @transform_4, window_bounds = array<i64: 32, 8>}, {transform_indices = @transform_5, window_bounds = array<i64: 1, 8>}]} {
    %c0 = arith.constant 0 : index
    %c0_0 = arith.constant 0 : index
    %0 = vector.load %arg1[%c0, %c0_0] : memref<32x8xf32, #tpu.memory_space<vmem>>, vector<32x8xf32>
    %c0_1 = arith.constant 0 : index
    %c0_2 = arith.constant 0 : index
    %1 = vector.load %arg2[%c0_1, %c0_2] : memref<32x8xf32, #tpu.memory_space<vmem>>, vector<32x8xf32>
    %c0_3 = arith.constant 0 : index
    %c0_4 = arith.constant 0 : index
    %2 = vector.load %arg3[%c0_3, %c0_4] : memref<195x32xf32, #tpu.memory_space<vmem>>, vector<195x32xf32>
    %cst = arith.constant dense<0.000000e+00> : vector<195x8xf32>
    %3 = tpu.matmul %2, %1, %cst {dimension_numbers = #tpu.dot_dimension_numbers<[1], [0], [0], [1], [0, 0, 1, 1], [], []>} : vector<195x32xf32>, vector<32x8xf32>, vector<195x8xf32> -> vector<195x8xf32>
    %c0_5 = arith.constant 0 : index
    %c0_6 = arith.constant 0 : index
    %4 = vector.load %arg4[%c0_5, %c0_6] : memref<195x1xf32, #tpu.memory_space<vmem>>, vector<195x1xf32>
    %5 = vector.broadcast %4 : vector<195x1xf32> to vector<195x8xf32>
    %6 = arith.addf %3, %5 : vector<195x8xf32>
    %cst_7 = arith.constant 0.000000e+00 : f32
    %7 = vector.broadcast %cst_7 : f32 to vector<1x8xf32>
    %8 = vector.extract_strided_slice %6 {offsets = [0, 0], sizes = [32, 8], strides = [1, 1]} : vector<195x8xf32> to vector<32x8xf32>
    %9 = vector.extract_strided_slice %6 {offsets = [96, 0], sizes = [32, 8], strides = [1, 1]} : vector<195x8xf32> to vector<32x8xf32>
    %10 = vector.extract_strided_slice %6 {offsets = [192, 0], sizes = [1, 8], strides = [1, 1]} : vector<195x8xf32> to vector<1x8xf32>
    %11 = arith.mulf %9, %8 : vector<32x8xf32>
    %cst_8 = arith.constant dense<0.000000e+00> : vector<8xf32>
    %12 = vector.multi_reduction <add>, %11, %cst_8 [0] : vector<32x8xf32> to vector<8xf32>
    %13 = vector.shape_cast %12 : vector<8xf32> to vector<1x8xf32>
    %14 = arith.mulf %9, %9 : vector<32x8xf32>
    %cst_9 = arith.constant dense<0.000000e+00> : vector<8xf32>
    %15 = vector.multi_reduction <add>, %14, %cst_9 [0] : vector<32x8xf32> to vector<8xf32>
    %16 = vector.shape_cast %15 : vector<8xf32> to vector<1x8xf32>
    %cst_10 = arith.constant 0.000000e+00 : f32
    %17 = vector.broadcast %cst_10 : f32 to vector<1x8xf32>
    %18 = arith.maximumf %13, %17 : vector<1x8xf32>
    %19 = math.absf %13 : vector<1x8xf32>
    %cst_11 = arith.constant 0.000000e+00 : f32
    %20 = vector.broadcast %cst_11 : f32 to vector<1x8xf32>
    %21 = arith.subf %20, %19 : vector<1x8xf32>
    %22 = math.exp %21 : vector<1x8xf32>
    %cst_12 = arith.constant 1.000000e+00 : f32
    %23 = vector.broadcast %cst_12 : f32 to vector<1x8xf32>
    %24 = arith.addf %23, %22 : vector<1x8xf32>
    %25 = math.log %24 : vector<1x8xf32>
    %26 = arith.addf %18, %25 : vector<1x8xf32>
    %cst_13 = arith.constant 1.000000e+00 : f32
    %27 = vector.broadcast %cst_13 : f32 to vector<1x8xf32>
    %28 = arith.subf %26, %27 : vector<1x8xf32>
    %29 = arith.subf %28, %13 : vector<1x8xf32>
    %30 = vector.broadcast %29 : vector<1x8xf32> to vector<32x8xf32>
    %31 = arith.mulf %30, %9 : vector<32x8xf32>
    %32 = tpu.reciprocal %16 : vector<1x8xf32> -> vector<1x8xf32>
    %33 = vector.broadcast %32 : vector<1x8xf32> to vector<32x8xf32>
    %34 = arith.mulf %31, %33 : vector<32x8xf32>
    %35 = arith.addf %8, %34 : vector<32x8xf32>
    %36 = arith.mulf %9, %0 : vector<32x8xf32>
    %cst_14 = arith.constant dense<0.000000e+00> : vector<8xf32>
    %37 = vector.multi_reduction <add>, %36, %cst_14 [0] : vector<32x8xf32> to vector<8xf32>
    %38 = vector.shape_cast %37 : vector<8xf32> to vector<1x8xf32>
    %39 = arith.addf %38, %10 : vector<1x8xf32>
    %40 = math.tanh %39 : vector<1x8xf32>
    %41 = vector.broadcast %40 : vector<1x8xf32> to vector<32x8xf32>
    %42 = arith.mulf %35, %41 : vector<32x8xf32>
    %43 = arith.addf %0, %42 : vector<32x8xf32>
    %44 = arith.mulf %40, %40 : vector<1x8xf32>
    %cst_15 = arith.constant 1.000000e+00 : f32
    %45 = vector.broadcast %cst_15 : f32 to vector<1x8xf32>
    %46 = arith.subf %45, %44 : vector<1x8xf32>
    %47 = arith.mulf %46, %28 : vector<1x8xf32>
    %cst_16 = arith.constant 1.000000e+00 : f32
    %48 = vector.broadcast %cst_16 : f32 to vector<1x8xf32>
    %49 = arith.addf %48, %47 : vector<1x8xf32>
    %50 = math.absf %49 : vector<1x8xf32>
    %51 = math.log %50 : vector<1x8xf32>
    %52 = arith.addf %7, %51 : vector<1x8xf32>
    %53 = vector.extract_strided_slice %6 {offsets = [32, 0], sizes = [32, 8], strides = [1, 1]} : vector<195x8xf32> to vector<32x8xf32>
    %54 = vector.extract_strided_slice %6 {offsets = [128, 0], sizes = [32, 8], strides = [1, 1]} : vector<195x8xf32> to vector<32x8xf32>
    %55 = vector.extract_strided_slice %6 {offsets = [193, 0], sizes = [1, 8], strides = [1, 1]} : vector<195x8xf32> to vector<1x8xf32>
    %56 = arith.mulf %54, %53 : vector<32x8xf32>
    %cst_17 = arith.constant dense<0.000000e+00> : vector<8xf32>
    %57 = vector.multi_reduction <add>, %56, %cst_17 [0] : vector<32x8xf32> to vector<8xf32>
    %58 = vector.shape_cast %57 : vector<8xf32> to vector<1x8xf32>
    %59 = arith.mulf %54, %54 : vector<32x8xf32>
    %cst_18 = arith.constant dense<0.000000e+00> : vector<8xf32>
    %60 = vector.multi_reduction <add>, %59, %cst_18 [0] : vector<32x8xf32> to vector<8xf32>
    %61 = vector.shape_cast %60 : vector<8xf32> to vector<1x8xf32>
    %cst_19 = arith.constant 0.000000e+00 : f32
    %62 = vector.broadcast %cst_19 : f32 to vector<1x8xf32>
    %63 = arith.maximumf %58, %62 : vector<1x8xf32>
    %64 = math.absf %58 : vector<1x8xf32>
    %cst_20 = arith.constant 0.000000e+00 : f32
    %65 = vector.broadcast %cst_20 : f32 to vector<1x8xf32>
    %66 = arith.subf %65, %64 : vector<1x8xf32>
    %67 = math.exp %66 : vector<1x8xf32>
    %cst_21 = arith.constant 1.000000e+00 : f32
    %68 = vector.broadcast %cst_21 : f32 to vector<1x8xf32>
    %69 = arith.addf %68, %67 : vector<1x8xf32>
    %70 = math.log %69 : vector<1x8xf32>
    %71 = arith.addf %63, %70 : vector<1x8xf32>
    %cst_22 = arith.constant 1.000000e+00 : f32
    %72 = vector.broadcast %cst_22 : f32 to vector<1x8xf32>
    %73 = arith.subf %71, %72 : vector<1x8xf32>
    %74 = arith.subf %73, %58 : vector<1x8xf32>
    %75 = vector.broadcast %74 : vector<1x8xf32> to vector<32x8xf32>
    %76 = arith.mulf %75, %54 : vector<32x8xf32>
    %77 = tpu.reciprocal %61 : vector<1x8xf32> -> vector<1x8xf32>
    %78 = vector.broadcast %77 : vector<1x8xf32> to vector<32x8xf32>
    %79 = arith.mulf %76, %78 : vector<32x8xf32>
    %80 = arith.addf %53, %79 : vector<32x8xf32>
    %81 = arith.mulf %54, %43 : vector<32x8xf32>
    %cst_23 = arith.constant dense<0.000000e+00> : vector<8xf32>
    %82 = vector.multi_reduction <add>, %81, %cst_23 [0] : vector<32x8xf32> to vector<8xf32>
    %83 = vector.shape_cast %82 : vector<8xf32> to vector<1x8xf32>
    %84 = arith.addf %83, %55 : vector<1x8xf32>
    %85 = math.tanh %84 : vector<1x8xf32>
    %86 = vector.broadcast %85 : vector<1x8xf32> to vector<32x8xf32>
    %87 = arith.mulf %80, %86 : vector<32x8xf32>
    %88 = arith.addf %43, %87 : vector<32x8xf32>
    %89 = arith.mulf %85, %85 : vector<1x8xf32>
    %cst_24 = arith.constant 1.000000e+00 : f32
    %90 = vector.broadcast %cst_24 : f32 to vector<1x8xf32>
    %91 = arith.subf %90, %89 : vector<1x8xf32>
    %92 = arith.mulf %91, %73 : vector<1x8xf32>
    %cst_25 = arith.constant 1.000000e+00 : f32
    %93 = vector.broadcast %cst_25 : f32 to vector<1x8xf32>
    %94 = arith.addf %93, %92 : vector<1x8xf32>
    %95 = math.absf %94 : vector<1x8xf32>
    %96 = math.log %95 : vector<1x8xf32>
    %97 = arith.addf %52, %96 : vector<1x8xf32>
    %98 = vector.extract_strided_slice %6 {offsets = [64, 0], sizes = [32, 8], strides = [1, 1]} : vector<195x8xf32> to vector<32x8xf32>
    %99 = vector.extract_strided_slice %6 {offsets = [160, 0], sizes = [32, 8], strides = [1, 1]} : vector<195x8xf32> to vector<32x8xf32>
    %100 = vector.extract_strided_slice %6 {offsets = [194, 0], sizes = [1, 8], strides = [1, 1]} : vector<195x8xf32> to vector<1x8xf32>
    %101 = arith.mulf %99, %98 : vector<32x8xf32>
    %cst_26 = arith.constant dense<0.000000e+00> : vector<8xf32>
    %102 = vector.multi_reduction <add>, %101, %cst_26 [0] : vector<32x8xf32> to vector<8xf32>
    %103 = vector.shape_cast %102 : vector<8xf32> to vector<1x8xf32>
    %104 = arith.mulf %99, %99 : vector<32x8xf32>
    %cst_27 = arith.constant dense<0.000000e+00> : vector<8xf32>
    %105 = vector.multi_reduction <add>, %104, %cst_27 [0] : vector<32x8xf32> to vector<8xf32>
    %106 = vector.shape_cast %105 : vector<8xf32> to vector<1x8xf32>
    %cst_28 = arith.constant 0.000000e+00 : f32
    %107 = vector.broadcast %cst_28 : f32 to vector<1x8xf32>
    %108 = arith.maximumf %103, %107 : vector<1x8xf32>
    %109 = math.absf %103 : vector<1x8xf32>
    %cst_29 = arith.constant 0.000000e+00 : f32
    %110 = vector.broadcast %cst_29 : f32 to vector<1x8xf32>
    %111 = arith.subf %110, %109 : vector<1x8xf32>
    %112 = math.exp %111 : vector<1x8xf32>
    %cst_30 = arith.constant 1.000000e+00 : f32
    %113 = vector.broadcast %cst_30 : f32 to vector<1x8xf32>
    %114 = arith.addf %113, %112 : vector<1x8xf32>
    %115 = math.log %114 : vector<1x8xf32>
    %116 = arith.addf %108, %115 : vector<1x8xf32>
    %cst_31 = arith.constant 1.000000e+00 : f32
    %117 = vector.broadcast %cst_31 : f32 to vector<1x8xf32>
    %118 = arith.subf %116, %117 : vector<1x8xf32>
    %119 = arith.subf %118, %103 : vector<1x8xf32>
    %120 = vector.broadcast %119 : vector<1x8xf32> to vector<32x8xf32>
    %121 = arith.mulf %120, %99 : vector<32x8xf32>
    %122 = tpu.reciprocal %106 : vector<1x8xf32> -> vector<1x8xf32>
    %123 = vector.broadcast %122 : vector<1x8xf32> to vector<32x8xf32>
    %124 = arith.mulf %121, %123 : vector<32x8xf32>
    %125 = arith.addf %98, %124 : vector<32x8xf32>
    %126 = arith.mulf %99, %88 : vector<32x8xf32>
    %cst_32 = arith.constant dense<0.000000e+00> : vector<8xf32>
    %127 = vector.multi_reduction <add>, %126, %cst_32 [0] : vector<32x8xf32> to vector<8xf32>
    %128 = vector.shape_cast %127 : vector<8xf32> to vector<1x8xf32>
    %129 = arith.addf %128, %100 : vector<1x8xf32>
    %130 = math.tanh %129 : vector<1x8xf32>
    %131 = vector.broadcast %130 : vector<1x8xf32> to vector<32x8xf32>
    %132 = arith.mulf %125, %131 : vector<32x8xf32>
    %133 = arith.addf %88, %132 : vector<32x8xf32>
    %134 = arith.mulf %130, %130 : vector<1x8xf32>
    %cst_33 = arith.constant 1.000000e+00 : f32
    %135 = vector.broadcast %cst_33 : f32 to vector<1x8xf32>
    %136 = arith.subf %135, %134 : vector<1x8xf32>
    %137 = arith.mulf %136, %118 : vector<1x8xf32>
    %cst_34 = arith.constant 1.000000e+00 : f32
    %138 = vector.broadcast %cst_34 : f32 to vector<1x8xf32>
    %139 = arith.addf %138, %137 : vector<1x8xf32>
    %140 = math.absf %139 : vector<1x8xf32>
    %141 = math.log %140 : vector<1x8xf32>
    %142 = arith.addf %97, %141 : vector<1x8xf32>
    %c0_35 = arith.constant 0 : index
    %c0_36 = arith.constant 0 : index
    %143 = vector.load %arg5[%c0_35, %c0_36] : memref<32x8xf32, #tpu.memory_space<vmem>>, vector<32x8xf32>
    tpu.vector_store %arg5[%c0_35, %c0_36], %133 {strides = array<i32>} : memref<32x8xf32, #tpu.memory_space<vmem>>, vector<32x8xf32>,
    %c0_37 = arith.constant 0 : index
    %c0_38 = arith.constant 0 : index
    %144 = vector.load %arg6[%c0_37, %c0_38] : memref<1x8xf32, #tpu.memory_space<vmem>>, vector<1x8xf32>
    tpu.vector_store %arg6[%c0_37, %c0_38], %142 {strides = array<i32>} : memref<1x8xf32, #tpu.memory_space<vmem>>, vector<1x8xf32>,
    return
  }
  func.func @transform_0(%arg0: i32) -> (i32, i32) {
    %c0_i32 = arith.constant 0 : i32
    %c0_i32_0 = arith.constant 0 : i32
    return %c0_i32, %arg0 : i32, i32
  }
  func.func @transform_1(%arg0: i32) -> (i32, i32) {
    %c0_i32 = arith.constant 0 : i32
    %c0_i32_0 = arith.constant 0 : i32
    return %c0_i32, %arg0 : i32, i32
  }
  func.func @transform_2(%arg0: i32) -> (i32, i32) {
    %c0_i32 = arith.constant 0 : i32
    %c0_i32_0 = arith.constant 0 : i32
    %c0_i32_1 = arith.constant 0 : i32
    return %c0_i32, %c0_i32_0 : i32, i32
  }
  func.func @transform_3(%arg0: i32) -> (i32, i32) {
    %c0_i32 = arith.constant 0 : i32
    %c0_i32_0 = arith.constant 0 : i32
    %c0_i32_1 = arith.constant 0 : i32
    return %c0_i32, %c0_i32_0 : i32, i32
  }
  func.func @transform_4(%arg0: i32) -> (i32, i32) {
    %c0_i32 = arith.constant 0 : i32
    %c0_i32_0 = arith.constant 0 : i32
    return %c0_i32, %arg0 : i32, i32
  }
  func.func @transform_5(%arg0: i32) -> (i32, i32) {
    %c0_i32 = arith.constant 0 : i32
    %c0_i32_0 = arith.constant 0 : i32
    return %c0_i32, %arg0 : i32, i32
  }
}

</mosaic_0001>

<llo_original>
// kernel: tpu_custom_call.1
$region0: #{tpu_custom_call.1}
  #allocation0 [shape = 'u32[]', space=smem, size = 0x4, offset = 0x4, fixed_abs, tag = 'smem constant byte address 0x4 - core index']
  #allocation1 [shape = 'u32[144,128]{1,0:T(1,128)}', space=vmem, size = 0x12000, scoped, tag = 'internal scratch']
  %s0 = inlined_call_operand.vmem [shape: f32[32,8], index: 0, kind: input, shape index: {}]
  %s1 = inlined_call_operand.vmem [shape: f32[32,8], index: 1, kind: input, shape index: {}]
  %s2 = inlined_call_operand.vmem [shape: f32[195,32], index: 2, kind: input, shape index: {}]
  %s3 = inlined_call_operand.vmem [shape: f32[195,1], index: 3, kind: input, shape index: {}]
  %s4 = inlined_call_operand.vmem [shape: f32[32,8], index: 4, kind: output, shape index: {0}]
  %s5 = inlined_call_operand.hbm [shape: f32[1,8], index: 5, kind: output, shape index: {1}]
  %6 = xla_tuple %s4, %s5
  %s7 = sld [smem:[#allocation0]]
  $region34: #{tpu_custom_call.1} parent=0
    _
  %s9 = ssub.s32 1, %s7
  %s10 = scalar_select 0, %s9, %s7
  $region1: #{tpu_custom_call.1} parent=0
    #allocation2 [shape = 'u8[512]{0}', space=vmem, size = 0x400, scoped, tag = 'output window, operand 1, single buffered']
    #allocation3 [shape = 's32[1]{0}', space=sflag, size = 0x4, scoped, tag = 'scoped memory for tpu_custom_call.1']
    %11 = vsyncpa [#allocation3], 0
    // Predicated region
    $region2: #{tpu_custom_call.1} parent=1 // pred_check
      _
    $region3: #{tpu_custom_call.1} parent=1 // pred_check_branch
      %13 = sbr.rel (0) target = $region5
    $region4: #{tpu_custom_call.1} parent=1 // pred_region
      _
    $region5: #{tpu_custom_call.1} parent=1 // pred_fallthru
      _
    // Predicated region
    $region6: #{tpu_custom_call.1} parent=1 // pred_check
      _
    $region7: #{tpu_custom_call.1} parent=1 // pred_check_branch
      %15 = sbr.rel (0) target = $region9
    $region8: #{tpu_custom_call.1} parent=1 // pred_region
      _
    $region9: #{tpu_custom_call.1} parent=1 // pred_fallthru
      _
    // Predicated region
    $region10: #{tpu_custom_call.1} parent=1 // pred_check
      _
    $region11: #{tpu_custom_call.1} parent=1 // pred_check_branch
      %17 = sbr.rel (0) target = $region13
    $region12: #{tpu_custom_call.1} parent=1 // pred_region
      _
    $region13: #{tpu_custom_call.1} parent=1 // pred_fallthru
      _
    // Predicated region
    $region14: #{tpu_custom_call.1} parent=1 // pred_check
      _
    $region15: #{tpu_custom_call.1} parent=1 // pred_check_branch
      %19 = sbr.rel (0) target = $region17
    $region16: #{tpu_custom_call.1} parent=1 // pred_region
      _
    $region17: #{tpu_custom_call.1} parent=1 // pred_fallthru
      _
    %v20 = vld [vmem:[%s0] sm:$0xff]
    %v21 = vld [vmem:[%s0 + $0x8] sm:$0xff]
    %v22 = vld [vmem:[%s0 + $0x10] sm:$0xff]
    %v23 = vld [vmem:[%s0 + $0x18] sm:$0xff]
    %v24 = vld [vmem:[%s1] sm:$0xff]
    %v25 = vld [vmem:[%s1 + $0x8] sm:$0xff]
    %v26 = vld [vmem:[%s1 + $0x10] sm:$0xff]
    %v27 = vld [vmem:[%s1 + $0x18] sm:$0xff]
    %v28 = vld [vmem:[%s2] sm:$0xff]
    %v29 = vld [vmem:[%s2 + $0x8] sm:$0xff]
    %v30 = vld [vmem:[%s2 + $0x10] sm:$0xff]
    %v31 = vld [vmem:[%s2 + $0x18] sm:$0xff]
    %v32 = vld [vmem:[%s2 + $0x20] sm:$0xff]
    %v33 = vld [vmem:[%s2 + $0x28] sm:$0xff]
    %v34 = vld [vmem:[%s2 + $0x30] sm:$0xff]
    %v35 = vld [vmem:[%s2 + $0x38] sm:$0xff]
    %v36 = vld [vmem:[%s2 + $0x40] sm:$0xff]
    %v37 = vld [vmem:[%s2 + $0x48] sm:$0xff]
    %v38 = vld [vmem:[%s2 + $0x50] sm:$0xff]
    %v39 = vld [vmem:[%s2 + $0x58] sm:$0xff]
    %v40 = vld [vmem:[%s2 + $0x60] sm:$0xff]
    %v41 = vld [vmem:[%s2 + $0x68] sm:$0xff]
    %v42 = vld [vmem:[%s2 + $0x70] sm:$0xff]
    %v43 = vld [vmem:[%s2 + $0x78] sm:$0xff]
    %v44 = vld [vmem:[%s2 + $0x80] sm:$0xff]
    %v45 = vld [vmem:[%s2 + $0x88] sm:$0xff]
    %v46 = vld [vmem:[%s2 + $0x90] sm:$0xff]
    %v47 = vld [vmem:[%s2 + $0x98] sm:$0xff]
    %v48 = vld [vmem:[%s2 + $0xa0] sm:$0xff]
    %v49 = vld [vmem:[%s2 + $0xa8] sm:$0xff]
    %v50 = vld [vmem:[%s2 + $0xb0] sm:$0xff]
    %v51 = vld [vmem:[%s2 + $0xb8] sm:$0xff]
    %v52 = vld [vmem:[%s2 + $0xc0] sm:$0x7]
    %v53 = vld [vmem:[%s3] sm:$0xff]
    %v54 = vld [vmem:[%s3 + $0x8] sm:$0xff]
    %v55 = vld [vmem:[%s3 + $0x10] sm:$0xff]
    %v56 = vld [vmem:[%s3 + $0x18] sm:$0xff]
    %v57 = vld [vmem:[%s3 + $0x20] sm:$0xff]
    %v58 = vld [vmem:[%s3 + $0x28] sm:$0xff]
    %v59 = vld [vmem:[%s3 + $0x30] sm:$0xff]
    %v60 = vld [vmem:[%s3 + $0x38] sm:$0xff]
    %v61 = vld [vmem:[%s3 + $0x40] sm:$0xff]
    %v62 = vld [vmem:[%s3 + $0x48] sm:$0xff]
    %v63 = vld [vmem:[%s3 + $0x50] sm:$0xff]
    %v64 = vld [vmem:[%s3 + $0x58] sm:$0xff]
    %v65 = vld [vmem:[%s3 + $0x60] sm:$0xff]
    %v66 = vld [vmem:[%s3 + $0x68] sm:$0xff]
    %v67 = vld [vmem:[%s3 + $0x70] sm:$0xff]
    %v68 = vld [vmem:[%s3 + $0x78] sm:$0xff]
    %v69 = vld [vmem:[%s3 + $0x80] sm:$0xff]
    %v70 = vld [vmem:[%s3 + $0x88] sm:$0xff]
    %v71 = vld [vmem:[%s3 + $0x90] sm:$0xff]
    %v72 = vld [vmem:[%s3 + $0x98] sm:$0xff]
    %v73 = vld [vmem:[%s3 + $0xa0] sm:$0xff]
    %v74 = vld [vmem:[%s3 + $0xa8] sm:$0xff]
    %v75 = vld [vmem:[%s3 + $0xb0] sm:$0xff]
    %v76 = vld [vmem:[%s3 + $0xb8] sm:$0xff]
    %v77 = vld [vmem:[%s3 + $0xc0] sm:$0x7]
    %79 = vset.pattern.permute.xlu0 0
    %80 = vperm.xlu0 %79, %v53
    %v81 = vpop.permute.xlu0 %80
    %84 = vset.pattern.permute.xlu0 0
    %85 = vperm.xlu0 %84, %v54
    %v86 = vpop.permute.xlu0 %85
    %89 = vset.pattern.permute.xlu0 0
    %90 = vperm.xlu0 %89, %v55
    %v91 = vpop.permute.xlu0 %90
    %94 = vset.pattern.permute.xlu0 0
    %95 = vperm.xlu0 %94, %v56
    %v96 = vpop.permute.xlu0 %95
    %99 = vset.pattern.permute.xlu0 0
    %100 = vperm.xlu0 %99, %v57
    %v101 = vpop.permute.xlu0 %100
    %104 = vset.pattern.permute.xlu0 0
    %105 = vperm.xlu0 %104, %v58
    %v106 = vpop.permute.xlu0 %105
    %109 = vset.pattern.permute.xlu0 0
    %110 = vperm.xlu0 %109, %v59
    %v111 = vpop.permute.xlu0 %110
    %114 = vset.pattern.permute.xlu0 0
    %115 = vperm.xlu0 %114, %v60
    %v116 = vpop.permute.xlu0 %115
    %119 = vset.pattern.permute.xlu0 0
    %120 = vperm.xlu0 %119, %v61
    %v121 = vpop.permute.xlu0 %120
    %124 = vset.pattern.permute.xlu0 0
    %125 = vperm.xlu0 %124, %v62
    %v126 = vpop.permute.xlu0 %125
    %129 = vset.pattern.permute.xlu0 0
    %130 = vperm.xlu0 %129, %v63
    %v131 = vpop.permute.xlu0 %130
    %134 = vset.pattern.permute.xlu0 0
    %135 = vperm.xlu0 %134, %v64
    %v136 = vpop.permute.xlu0 %135
    %139 = vset.pattern.permute.xlu0 0
    %140 = vperm.xlu0 %139, %v65
    %v141 = vpop.permute.xlu0 %140
    %144 = vset.pattern.permute.xlu0 0
    %145 = vperm.xlu0 %144, %v66
    %v146 = vpop.permute.xlu0 %145
    %149 = vset.pattern.permute.xlu0 0
    %150 = vperm.xlu0 %149, %v67
    %v151 = vpop.permute.xlu0 %150
    %154 = vset.pattern.permute.xlu0 0
    %155 = vperm.xlu0 %154, %v68
    %v156 = vpop.permute.xlu0 %155
    %159 = vset.pattern.permute.xlu0 0
    %160 = vperm.xlu0 %159, %v69
    %v161 = vpop.permute.xlu0 %160
    %164 = vset.pattern.permute.xlu0 0
    %165 = vperm.xlu0 %164, %v70
    %v166 = vpop.permute.xlu0 %165
    %169 = vset.pattern.permute.xlu0 0
    %170 = vperm.xlu0 %169, %v71
    %v171 = vpop.permute.xlu0 %170
    %174 = vset.pattern.permute.xlu0 0
    %175 = vperm.xlu0 %174, %v72
    %v176 = vpop.permute.xlu0 %175
    %179 = vset.pattern.permute.xlu0 0
    %180 = vperm.xlu0 %179, %v73
    %v181 = vpop.permute.xlu0 %180
    %184 = vset.pattern.permute.xlu0 0
    %185 = vperm.xlu0 %184, %v74
    %v186 = vpop.permute.xlu0 %185
    %189 = vset.pattern.permute.xlu0 0
    %190 = vperm.xlu0 %189, %v75
    %v191 = vpop.permute.xlu0 %190
    %194 = vset.pattern.permute.xlu0 0
    %195 = vperm.xlu0 %194, %v76
    %v196 = vpop.permute.xlu0 %195
    %199 = vset.pattern.permute.xlu0 0
    %200 = vperm.xlu0 %199, %v77
    %v201 = vpop.permute.xlu0 %200
    %vm203 = vcmask 261120
    %v205 = vsel %vm203, %v28, 0
    %v208 = vsel %vm203, %v29, 0
    %v211 = vsel %vm203, %v30, 0
    %v214 = vsel %vm203, %v31, 0
    %v217 = vsel %vm203, %v32, 0
    %v220 = vsel %vm203, %v33, 0
    %v223 = vsel %vm203, %v34, 0
    %v226 = vsel %vm203, %v35, 0
    %v229 = vsel %vm203, %v36, 0
    %v232 = vsel %vm203, %v37, 0
    %v235 = vsel %vm203, %v38, 0
    %v238 = vsel %vm203, %v39, 0
    %v241 = vsel %vm203, %v40, 0
    %v244 = vsel %vm203, %v41, 0
    %v247 = vsel %vm203, %v42, 0
    %v250 = vsel %vm203, %v43, 0
    %v253 = vsel %vm203, %v44, 0
    %v256 = vsel %vm203, %v45, 0
    %v259 = vsel %vm203, %v46, 0
    %v262 = vsel %vm203, %v47, 0
    %v265 = vsel %vm203, %v48, 0
    %v268 = vsel %vm203, %v49, 0
    %v271 = vsel %vm203, %v50, 0
    %v274 = vsel %vm203, %v51, 0
    %v277 = vsel %vm203, %v52, 0
    %279 = vmatprep.subr.mxu0 0.0
    %280 = vmatpush1.msra.mxu0 0.0
    %281 = vmatprep.subr.mxu0 0.0
    %282 = vmatpush1.msra.mxu0 0.0
    %283 = vmatprep.subr.mxu0 0.0
    %284 = vmatpush1.msra.mxu0 0.0
    %285 = vmatprep.subr.mxu0 0.0
    %286 = vmatpush1.msra.mxu0 0.0
    %287 = vmatprep.subr.mxu0 0.0
    %288 = vmatpush1.msra.mxu0 0.0
    %289 = vmatprep.subr.mxu0 0.0
    %290 = vmatpush1.msra.mxu0 0.0
    %291 = vmatprep.subr.mxu0 0.0
    %292 = vmatpush1.msra.mxu0 0.0
    %293 = vmatprep.subr.mxu0 0.0
    %294 = vmatpush1.msra.mxu0 0.0
    %295 = vmatprep.subr.mxu0 0.0
    %296 = vmatpush1.msra.mxu0 0.0
    %297 = vmatprep.subr.mxu0 0.0
    %298 = vmatpush1.msra.mxu0 0.0
    %299 = vmatprep.subr.mxu0 0.0
    %300 = vmatpush1.msra.mxu0 0.0
    %301 = vmatprep.subr.mxu0 0.0
    %302 = vmatpush1.msra.mxu0 0.0
    %303 = vmatprep.subr.mxu0 0.0
    %304 = vmatpush1.msra.mxu0 %v27
    %305 = vmatprep.subr.mxu0 0.0
    %306 = vmatpush1.msra.mxu0 %v26
    %307 = vmatprep.subr.mxu0 0.0
    %308 = vmatpush1.msra.mxu0 %v25
    %309 = vmatprep.subr.mxu0 0.0
    %310 = vmatpush1.msra.mxu0 %v24
    %311 = vmatprep.subr.mxu0 0.0
    %312 = vmatpush2.msra.mxu0 0.0
    %313 = vmatprep.subr.mxu0 0.0
    %314 = vmatpush2.msra.mxu0 0.0
    %315 = vmatprep.subr.mxu0 0.0
    %316 = vmatpush2.msra.mxu0 0.0
    %317 = vmatprep.subr.mxu0 0.0
    %318 = vmatpush2.msra.mxu0 0.0
    %319 = vmatprep.subr.mxu0 0.0
    %320 = vmatpush2.msra.mxu0 0.0
    %321 = vmatprep.subr.mxu0 0.0
    %322 = vmatpush2.msra.mxu0 0.0
    %323 = vmatprep.subr.mxu0 0.0
    %324 = vmatpush2.msra.mxu0 0.0
    %325 = vmatprep.subr.mxu0 0.0
    %326 = vmatpush2.msra.mxu0 0.0
    %327 = vmatprep.subr.mxu0 0.0
    %328 = vmatpush2.msra.mxu0 0.0
    %329 = vmatprep.subr.mxu0 0.0
    %330 = vmatpush2.msra.mxu0 0.0
    %331 = vmatprep.subr.mxu0 0.0
    %332 = vmatpush2.msra.mxu0 0.0
    %333 = vmatprep.subr.mxu0 0.0
    %334 = vmatpush2.msra.mxu0 0.0
    %335 = vmatprep.subr.mxu0 0.0
    %336 = vmatpush2.msra.mxu0 0.0
    %337 = vmatprep.subr.mxu0 0.0
    %338 = vmatpush2.msra.mxu0 0.0
    %339 = vmatprep.subr.mxu0 0.0
    %340 = vmatpush2.msra.mxu0 0.0
    %341 = vmatprep.subr.mxu0 0.0
    %342 = vmatpush2.msra.mxu0 0.0
    %343 = vmatprep.mubr.f32.mxu0 0.0
    %344 = vmatmul.mubr.f32.gmra.mxu0 %v205
    %v345 = vpop.f32.mrf.mxu0
    %v346 = vadd.f32 %v81, %v345
    %v347 = vpop.f32.mrf.mxu0
    %348 = vmatprep.mubr.f32.mxu0 0.0
    %349 = vmatmul.mubr.f32.gmra.mxu0 %v208
    %v350 = vpop.f32.mrf.mxu0
    %v351 = vadd.f32 %v86, %v350
    %v352 = vpop.f32.mrf.mxu0
    %353 = vmatprep.mubr.f32.mxu0 0.0
    %354 = vmatmul.mubr.f32.gmra.mxu0 %v211
    %v355 = vpop.f32.mrf.mxu0
    %v356 = vadd.f32 %v91, %v355
    %v357 = vpop.f32.mrf.mxu0
    %358 = vmatprep.mubr.f32.mxu0 0.0
    %359 = vmatmul.mubr.f32.gmra.mxu0 %v214
    %v360 = vpop.f32.mrf.mxu0
    %v361 = vadd.f32 %v96, %v360
    %v362 = vpop.f32.mrf.mxu0
    %363 = vmatprep.mubr.f32.mxu0 0.0
    %364 = vmatmul.mubr.f32.gmra.mxu0 %v217
    %v365 = vpop.f32.mrf.mxu0
    %v366 = vadd.f32 %v101, %v365
    %v367 = vpop.f32.mrf.mxu0
    %368 = vmatprep.mubr.f32.mxu0 0.0
    %369 = vmatmul.mubr.f32.gmra.mxu0 %v220
    %v370 = vpop.f32.mrf.mxu0
    %v371 = vadd.f32 %v106, %v370
    %v372 = vpop.f32.mrf.mxu0
    %373 = vmatprep.mubr.f32.mxu0 0.0
    %374 = vmatmul.mubr.f32.gmra.mxu0 %v223
    %v375 = vpop.f32.mrf.mxu0
    %v376 = vadd.f32 %v111, %v375
    %v377 = vpop.f32.mrf.mxu0
    %378 = vmatprep.mubr.f32.mxu0 0.0
    %379 = vmatmul.mubr.f32.gmra.mxu0 %v226
    %v380 = vpop.f32.mrf.mxu0
    %v381 = vadd.f32 %v116, %v380
    %v382 = vpop.f32.mrf.mxu0
    %383 = vmatprep.mubr.f32.mxu0 0.0
    %384 = vmatmul.mubr.f32.gmra.mxu0 %v229
    %v385 = vpop.f32.mrf.mxu0
    %v386 = vadd.f32 %v121, %v385
    %v387 = vpop.f32.mrf.mxu0
    %388 = vmatprep.mubr.f32.mxu0 0.0
    %389 = vmatmul.mubr.f32.gmra.mxu0 %v232
    %v390 = vpop.f32.mrf.mxu0
    %v391 = vadd.f32 %v126, %v390
    %v392 = vpop.f32.mrf.mxu0
    %393 = vmatprep.mubr.f32.mxu0 0.0
    %394 = vmatmul.mubr.f32.gmra.mxu0 %v235
    %v395 = vpop.f32.mrf.mxu0
    %v396 = vadd.f32 %v131, %v395
    %v397 = vpop.f32.mrf.mxu0
    %398 = vmatprep.mubr.f32.mxu0 0.0
    %399 = vmatmul.mubr.f32.gmra.mxu0 %v238
    %v400 = vpop.f32.mrf.mxu0
    %v401 = vadd.f32 %v136, %v400
    %v402 = vpop.f32.mrf.mxu0
    %403 = vmatprep.mubr.f32.mxu0 0.0
    %404 = vmatmul.mubr.f32.gmra.mxu0 %v241
    %v405 = vpop.f32.mrf.mxu0
    %v406 = vadd.f32 %v141, %v405
    %v407 = vpop.f32.mrf.mxu0
    %408 = vmatprep.mubr.f32.mxu0 0.0
    %409 = vmatmul.mubr.f32.gmra.mxu0 %v244
    %v410 = vpop.f32.mrf.mxu0
    %v411 = vadd.f32 %v146, %v410
    %v412 = vpop.f32.mrf.mxu0
    %413 = vmatprep.mubr.f32.mxu0 0.0
    %414 = vmatmul.mubr.f32.gmra.mxu0 %v247
    %v415 = vpop.f32.mrf.mxu0
    %v416 = vadd.f32 %v151, %v415
    %v417 = vpop.f32.mrf.mxu0
    %418 = vmatprep.mubr.f32.mxu0 0.0
    %419 = vmatmul.mubr.f32.gmra.mxu0 %v250
    %v420 = vpop.f32.mrf.mxu0
    %v421 = vadd.f32 %v156, %v420
    %v422 = vpop.f32.mrf.mxu0
    %423 = vmatprep.mubr.f32.mxu0 0.0
    %424 = vmatmul.mubr.f32.gmra.mxu0 %v253
    %v425 = vpop.f32.mrf.mxu0
    %v426 = vadd.f32 %v161, %v425
    %v427 = vpop.f32.mrf.mxu0
    %428 = vmatprep.mubr.f32.mxu0 0.0
    %429 = vmatmul.mubr.f32.gmra.mxu0 %v256
    %v430 = vpop.f32.mrf.mxu0
    %v431 = vadd.f32 %v166, %v430
    %v432 = vpop.f32.mrf.mxu0
    %433 = vmatprep.mubr.f32.mxu0 0.0
    %434 = vmatmul.mubr.f32.gmra.mxu0 %v259
    %v435 = vpop.f32.mrf.mxu0
    %v436 = vadd.f32 %v171, %v435
    %v437 = vpop.f32.mrf.mxu0
    %438 = vmatprep.mubr.f32.mxu0 0.0
    %439 = vmatmul.mubr.f32.gmra.mxu0 %v262
    %v440 = vpop.f32.mrf.mxu0
    %v441 = vadd.f32 %v176, %v440
    %v442 = vpop.f32.mrf.mxu0
    %443 = vmatprep.mubr.f32.mxu0 0.0
    %444 = vmatmul.mubr.f32.gmra.mxu0 %v265
    %v445 = vpop.f32.mrf.mxu0
    %v446 = vadd.f32 %v181, %v445
    %v447 = vpop.f32.mrf.mxu0
    %448 = vmatprep.mubr.f32.mxu0 0.0
    %449 = vmatmul.mubr.f32.gmra.mxu0 %v268
    %v450 = vpop.f32.mrf.mxu0
    %v451 = vadd.f32 %v186, %v450
    %v452 = vpop.f32.mrf.mxu0
    %453 = vmatprep.mubr.f32.mxu0 0.0
    %454 = vmatmul.mubr.f32.gmra.mxu0 %v271
    %v455 = vpop.f32.mrf.mxu0
    %v456 = vadd.f32 %v191, %v455
    %v457 = vpop.f32.mrf.mxu0
    %458 = vmatprep.mubr.f32.mxu0 0.0
    %459 = vmatmul.mubr.f32.gmra.mxu0 %v274
    %v460 = vpop.f32.mrf.mxu0
    %v461 = vadd.f32 %v196, %v460
    %v462 = vpop.f32.mrf.mxu0
    %463 = vmatprep.mubr.f32.mxu0 0.0
    %464 = vmatmul.mubr.f32.gmra.mxu0 %v277
    %v465 = vpop.f32.mrf.mxu0
    %v466 = vadd.f32 %v201, %v465
    %v467 = vpop.f32.mrf.mxu0
    %468 = vdwg.mxu0
    %v469 = vmul.f32 %v406, %v346
    %v470 = vmul.f32 %v411, %v351
    %v471 = vmul.f32 %v416, %v356
    %v472 = vmul.f32 %v421, %v361
    %vm473 = vcmask 64512
    %v474 = vsel %vm473, %v469, 0.0
    %v475 = vsel %vm473, %v470, 0.0
    %v476 = vadd.f32 %v474, %v475
    %v477 = vsel %vm473, %v471, 0.0
    %v478 = vadd.f32 %v476, %v477
    %v479 = vsel %vm473, %v472, 0.0
    %v480 = vadd.f32 %v478, %v479
    %v481 = vrot.slane %v480, 4
    %v482 = vadd.f32 %v480, %v481
    %v483 = vrot.slane %v482, 2
    %v484 = vadd.f32 %v482, %v483
    %v485 = vrot.slane %v484, 1
    %v486 = vadd.f32 %v484, %v485
    %v487 = vmul.f32 %v406, %v406
    %v488 = vmul.f32 %v411, %v411
    %v489 = vmul.f32 %v416, %v416
    %v490 = vmul.f32 %v421, %v421
    %v491 = vsel %vm473, %v487, 0.0
    %v492 = vsel %vm473, %v488, 0.0
    %v493 = vadd.f32 %v491, %v492
    %v494 = vsel %vm473, %v489, 0.0
    %v495 = vadd.f32 %v493, %v494
    %v496 = vsel %vm473, %v490, 0.0
    %v497 = vadd.f32 %v495, %v496
    %v498 = vrot.slane %v497, 4
    %v499 = vadd.f32 %v497, %v498
    %v500 = vrot.slane %v499, 2
    %v501 = vadd.f32 %v499, %v500
    %v502 = vrot.slane %v501, 1
    %v503 = vadd.f32 %v501, %v502
    %v504 = vmax.f32 %v486, 0.0
    %v505 = vand.u32 2147483647, %v486
    %v506 = vsub.f32 0.0, %v505
    %v507 = vmul.f32 %v506, 1.442695
    %v508 = vpow.pop %v507
    %v509 = vadd.f32 %v508, 1.0
    %v510 = vlog2.pop %v509
    %v511 = vmul.f32 %v510, 0.6931472
    %v512 = vadd.f32 %v504, %v511
    %v513 = vsub.f32 %v512, 1.0
    %v514 = vsub.f32 %v513, %v486
    %v515 = vmul.f32 %v514, %v406
    %v516 = vmul.f32 %v514, %v411
    %v517 = vmul.f32 %v514, %v416
    %v518 = vmul.f32 %v514, %v421
    %v519 = vrcp.pop %v503
    %v520 = vmul.f32 %v515, %v519
    %v521 = vmul.f32 %v516, %v519
    %v522 = vmul.f32 %v517, %v519
    %v523 = vmul.f32 %v518, %v519
    %v524 = vadd.f32 %v346, %v520
    %v525 = vadd.f32 %v351, %v521
    %v526 = vadd.f32 %v356, %v522
    %v527 = vadd.f32 %v361, %v523
    %v528 = vmul.f32 %v406, %v20
    %v529 = vmul.f32 %v411, %v21
    %v530 = vmul.f32 %v416, %v22
    %v531 = vmul.f32 %v421, %v23
    %v532 = vsel %vm473, %v528, 0.0
    %v533 = vsel %vm473, %v529, 0.0
    %v534 = vadd.f32 %v532, %v533
    %v535 = vsel %vm473, %v530, 0.0
    %v536 = vadd.f32 %v534, %v535
    %v537 = vsel %vm473, %v531, 0.0
    %v538 = vadd.f32 %v536, %v537
    %v539 = vrot.slane %v538, 4
    %v540 = vadd.f32 %v538, %v539
    %v541 = vrot.slane %v540, 2
    %v542 = vadd.f32 %v540, %v541
    %v543 = vrot.slane %v542, 1
    %v544 = vadd.f32 %v542, %v543
    %v545 = vadd.f32 %v544, %v466
    %v546 = vtanh.pop %v545
    %v547 = vlaneseq
    %v548 = vshrl.u32 %v547, 7
    %v549 = vsub.s32 0, %v548
    %v550 = vrot.slane %v546, %v549
    %v551 = vmul.f32 %v524, %v550
    %v552 = vmul.f32 %v525, %v550
    %v553 = vmul.f32 %v526, %v550
    %v554 = vmul.f32 %v527, %v550
    %v555 = vadd.f32 %v20, %v551
    %v556 = vadd.f32 %v21, %v552
    %v557 = vadd.f32 %v22, %v553
    %v558 = vadd.f32 %v23, %v554
    %v559 = vmul.f32 %v546, %v546
    %v560 = vsub.f32 1.0, %v559
    %v561 = vmul.f32 %v560, %v513
    %v562 = vadd.f32 %v561, 1.0
    %v563 = vand.u32 2147483647, %v562
    %v564 = vlog2.pop %v563
    %v565 = vmul.f32 %v564, 0.6931472
    %v566 = vadd.f32 %v565, 0.0
    %v567 = vmul.f32 %v426, %v366
    %v568 = vmul.f32 %v431, %v371
    %v569 = vmul.f32 %v436, %v376
    %v570 = vmul.f32 %v441, %v381
    %v571 = vsel %vm473, %v567, 0.0
    %v572 = vsel %vm473, %v568, 0.0
    %v573 = vadd.f32 %v571, %v572
    %v574 = vsel %vm473, %v569, 0.0
    %v575 = vadd.f32 %v573, %v574
    %v576 = vsel %vm473, %v570, 0.0
    %v577 = vadd.f32 %v575, %v576
    %v578 = vrot.slane %v577, 4
    %v579 = vadd.f32 %v577, %v578
    %v580 = vrot.slane %v579, 2
    %v581 = vadd.f32 %v579, %v580
    %v582 = vrot.slane %v581, 1
    %v583 = vadd.f32 %v581, %v582
    %v584 = vmul.f32 %v426, %v426
    %v585 = vmul.f32 %v431, %v431
    %v586 = vmul.f32 %v436, %v436
    %v587 = vmul.f32 %v441, %v441
    %v588 = vsel %vm473, %v584, 0.0
    %v589 = vsel %vm473, %v585, 0.0
    %v590 = vadd.f32 %v588, %v589
    %v591 = vsel %vm473, %v586, 0.0
    %v592 = vadd.f32 %v590, %v591
    %v593 = vsel %vm473, %v587, 0.0
    %v594 = vadd.f32 %v592, %v593
    %v595 = vrot.slane %v594, 4
    %v596 = vadd.f32 %v594, %v595
    %v597 = vrot.slane %v596, 2
    %v598 = vadd.f32 %v596, %v597
    %v599 = vrot.slane %v598, 1
    %v600 = vadd.f32 %v598, %v599
    %v601 = vmax.f32 %v583, 0.0
    %v602 = vand.u32 2147483647, %v583
    %v603 = vsub.f32 0.0, %v602
    %v604 = vmul.f32 %v603, 1.442695
    %v605 = vpow.pop %v604
    %v606 = vadd.f32 %v605, 1.0
    %v607 = vlog2.pop %v606
    %v608 = vmul.f32 %v607, 0.6931472
    %v609 = vadd.f32 %v601, %v608
    %v610 = vsub.f32 %v609, 1.0
    %v611 = vsub.f32 %v610, %v583
    %v612 = vmul.f32 %v611, %v426
    %v613 = vmul.f32 %v611, %v431
    %v614 = vmul.f32 %v611, %v436
    %v615 = vmul.f32 %v611, %v441
    %v616 = vrcp.pop %v600
    %v617 = vmul.f32 %v612, %v616
    %v618 = vmul.f32 %v613, %v616
    %v619 = vmul.f32 %v614, %v616
    %v620 = vmul.f32 %v615, %v616
    %v621 = vadd.f32 %v366, %v617
    %v622 = vadd.f32 %v371, %v618
    %v623 = vadd.f32 %v376, %v619
    %v624 = vadd.f32 %v381, %v620
    %v625 = vmul.f32 %v426, %v555
    %v626 = vmul.f32 %v431, %v556
    %v627 = vmul.f32 %v436, %v557
    %v628 = vmul.f32 %v441, %v558
    %v629 = vsel %vm473, %v625, 0.0
    %v630 = vsel %vm473, %v626, 0.0
    %v631 = vadd.f32 %v629, %v630
    %v632 = vsel %vm473, %v627, 0.0
    %v633 = vadd.f32 %v631, %v632
    %v634 = vsel %vm473, %v628, 0.0
    %v635 = vadd.f32 %v633, %v634
    %v636 = vrot.slane %v635, 4
    %v637 = vadd.f32 %v635, %v636
    %v638 = vrot.slane %v637, 2
    %v639 = vadd.f32 %v637, %v638
    %v640 = vrot.slane %v639, 1
    %v641 = vadd.f32 %v639, %v640
    %v642 = vadd.f32 %v641, %v466
    %v643 = vtanh.pop %v642
    %v644 = vlaneseq
    %v645 = vshrl.u32 %v644, 7
    %v646 = vsub.s32 1, %v645
    %v647 = vrot.slane %v643, %v646
    %v648 = vmul.f32 %v621, %v647
    %v649 = vmul.f32 %v622, %v647
    %v650 = vmul.f32 %v623, %v647
    %v651 = vmul.f32 %v624, %v647
    %v652 = vadd.f32 %v555, %v648
    %v653 = vadd.f32 %v556, %v649
    %v654 = vadd.f32 %v557, %v650
    %v655 = vadd.f32 %v558, %v651
    %v656 = vmul.f32 %v643, %v643
    %v657 = vsub.f32 1.0, %v656
    %v658 = vmul.f32 %v657, %v610
    %v659 = vadd.f32 %v658, 1.0
    %v660 = vand.u32 2147483647, %v659
    %v661 = vlog2.pop %v660
    %v662 = vmul.f32 %v661, 0.6931472
    %v664 = vrot.slane %v662, 1
    %v666 = vadd.f32 %v566, %v664
    %v667 = vmul.f32 %v446, %v386
    %v668 = vmul.f32 %v451, %v391
    %v669 = vmul.f32 %v456, %v396
    %v670 = vmul.f32 %v461, %v401
    %v671 = vsel %vm473, %v667, 0.0
    %v672 = vsel %vm473, %v668, 0.0
    %v673 = vadd.f32 %v671, %v672
    %v674 = vsel %vm473, %v669, 0.0
    %v675 = vadd.f32 %v673, %v674
    %v676 = vsel %vm473, %v670, 0.0
    %v677 = vadd.f32 %v675, %v676
    %v678 = vrot.slane %v677, 4
    %v679 = vadd.f32 %v677, %v678
    %v680 = vrot.slane %v679, 2
    %v681 = vadd.f32 %v679, %v680
    %v682 = vrot.slane %v681, 1
    %v683 = vadd.f32 %v681, %v682
    %v684 = vmul.f32 %v446, %v446
    %v685 = vmul.f32 %v451, %v451
    %v686 = vmul.f32 %v456, %v456
    %v687 = vmul.f32 %v461, %v461
    %v688 = vsel %vm473, %v684, 0.0
    %v689 = vsel %vm473, %v685, 0.0
    %v690 = vadd.f32 %v688, %v689
    %v691 = vsel %vm473, %v686, 0.0
    %v692 = vadd.f32 %v690, %v691
    %v693 = vsel %vm473, %v687, 0.0
    %v694 = vadd.f32 %v692, %v693
    %v695 = vrot.slane %v694, 4
    %v696 = vadd.f32 %v694, %v695
    %v697 = vrot.slane %v696, 2
    %v698 = vadd.f32 %v696, %v697
    %v699 = vrot.slane %v698, 1
    %v700 = vadd.f32 %v698, %v699
    %v701 = vmax.f32 %v683, 0.0
    %v702 = vand.u32 2147483647, %v683
    %v703 = vsub.f32 0.0, %v702
    %v704 = vmul.f32 %v703, 1.442695
    %v705 = vpow.pop %v704
    %v706 = vadd.f32 %v705, 1.0
    %v707 = vlog2.pop %v706
    %v708 = vmul.f32 %v707, 0.6931472
    %v709 = vadd.f32 %v701, %v708
    %v710 = vsub.f32 %v709, 1.0
    %v711 = vsub.f32 %v710, %v683
    %v712 = vmul.f32 %v711, %v446
    %v713 = vmul.f32 %v711, %v451
    %v714 = vmul.f32 %v711, %v456
    %v715 = vmul.f32 %v711, %v461
    %v716 = vrcp.pop %v700
    %v717 = vmul.f32 %v712, %v716
    %v718 = vmul.f32 %v713, %v716
    %v719 = vmul.f32 %v714, %v716
    %v720 = vmul.f32 %v715, %v716
    %v721 = vadd.f32 %v386, %v717
    %v722 = vadd.f32 %v391, %v718
    %v723 = vadd.f32 %v396, %v719
    %v724 = vadd.f32 %v401, %v720
    %v725 = vmul.f32 %v446, %v652
    %v726 = vmul.f32 %v451, %v653
    %v727 = vmul.f32 %v456, %v654
    %v728 = vmul.f32 %v461, %v655
    %v729 = vsel %vm473, %v725, 0.0
    %v730 = vsel %vm473, %v726, 0.0
    %v731 = vadd.f32 %v729, %v730
    %v732 = vsel %vm473, %v727, 0.0
    %v733 = vadd.f32 %v731, %v732
    %v734 = vsel %vm473, %v728, 0.0
    %v735 = vadd.f32 %v733, %v734
    %v736 = vrot.slane %v735, 4
    %v737 = vadd.f32 %v735, %v736
    %v738 = vrot.slane %v737, 2
    %v739 = vadd.f32 %v737, %v738
    %v740 = vrot.slane %v739, 1
    %v741 = vadd.f32 %v739, %v740
    %v742 = vadd.f32 %v741, %v466
    %v743 = vtanh.pop %v742
    %v744 = vlaneseq
    %v745 = vshrl.u32 %v744, 7
    %v746 = vsub.s32 2, %v745
    %v747 = vrot.slane %v743, %v746
    %v748 = vmul.f32 %v721, %v747
    %v749 = vmul.f32 %v722, %v747
    %v750 = vmul.f32 %v723, %v747
    %v751 = vmul.f32 %v724, %v747
    %v752 = vadd.f32 %v652, %v748
    %v753 = vadd.f32 %v653, %v749
    %v754 = vadd.f32 %v654, %v750
    %v755 = vadd.f32 %v655, %v751
    %v756 = vmul.f32 %v743, %v743
    %v757 = vsub.f32 1.0, %v756
    %v758 = vmul.f32 %v757, %v710
    %v759 = vadd.f32 %v758, 1.0
    %v760 = vand.u32 2147483647, %v759
    %v761 = vlog2.pop %v760
    %v762 = vmul.f32 %v761, 0.6931472
    %v764 = vrot.slane %v762, 2
    %v766 = vadd.f32 %v666, %v764
    %767 = vst.msk [vmem:[%s4] sm:$0xff] %vm473, %v752
    %768 = vst.msk [vmem:[%s4 + $0x8] sm:$0xff] %vm473, %v753
    %769 = vst.msk [vmem:[%s4 + $0x10] sm:$0xff] %vm473, %v754
    %770 = vst.msk [vmem:[%s4 + $0x18] sm:$0xff] %vm473, %v755
    %vm771 = vcmask 57344
    %772 = vst.msk [vmem:[#allocation2] sm:$0x1] %vm771, %v766
    // Predicated region
    $region18: #{tpu_custom_call.1} parent=1 // pred_check
      _
    $region19: #{tpu_custom_call.1} parent=1 // pred_check_branch
      %774 = sbr.rel (0) target = $region21
    $region20: #{tpu_custom_call.1} parent=1 // pred_region
      _
    $region21: #{tpu_custom_call.1} parent=1 // pred_fallthru
      _
    // Predicated region
    $region22: #{tpu_custom_call.1} parent=1 // pred_check
      _
    $region23: #{tpu_custom_call.1} parent=1 // pred_check_branch
      %776 = sbr.rel (0) target = $region25
    $region24: #{tpu_custom_call.1} parent=1 // pred_region
      %s778 = ssub.s32 16, 16
      %779 = vsyncadd [#allocation3], %s778
      %s781 = sshll.u32 [#allocation2], 4
      %s782 = int_to_ptr.vmem [resolvable:$true] %s781
      %784 = dma.vmem_to_hbm [thread:$0]  %s782, 16, %s5, [#allocation3]
    $region25: #{tpu_custom_call.1} parent=1 // pred_fallthru
      _
    // Predicated region
    $region26: #{tpu_custom_call.1} parent=1 // pred_check
      _
    $region27: #{tpu_custom_call.1} parent=1 // pred_check_branch
      %786 = sbr.rel (0) target = $region29
    $region28: #{tpu_custom_call.1} parent=1 // pred_region
      _
    $region29: #{tpu_custom_call.1} parent=1 // pred_fallthru
      _
    // Predicated region
    $region30: #{tpu_custom_call.1} parent=1 // pred_check
      _
    $region31: #{tpu_custom_call.1} parent=1 // pred_check_branch
      %788 = sbr.rel (0) target = $region33
    $region32: #{tpu_custom_call.1} parent=1 // pred_region
      %789 = dma.done [#allocation3], 16
    $region33: #{tpu_custom_call.1} parent=1 // pred_fallthru
      _
    %790 = vsyncpa [#allocation3], 1

</llo_original>
